<compile_context>
chip_gen: v6e
topology: v6e:2x2x1
jax: 0.10.0
libtpu: 0.0.40
codegen_flags: <defaults>
</compile_context>

<pallas_src>
import functools

import jax
import jax.numpy as jnp
from jax.experimental import pallas as pl
from jax.experimental.pallas import tpu as pltpu


# --------------------------------------------------------------------------- #
# helpers
# --------------------------------------------------------------------------- #
def _round_up(x, m):
    return ((x + m - 1) // m) * m


def _itemsize(dt):
    return jnp.dtype(dt).itemsize


def _packed_sublane(dtype):
    # packed sublane count: f32 -> 8, bf16 -> 16, int8/fp8 -> 32
    return {4: 8, 2: 16, 1: 32}.get(_itemsize(dtype), 8)


def _tpu_vmem_capacity():
    try:
        cap = getattr(pltpu.get_tpu_info(), "vmem_capacity_bytes", None)
        if cap:
            return int(cap)
    except Exception:
        pass
    return 64 << 20  # conservative (v7x-sized) fallback


def _vmem_est_resident(tile_n, in_feats, out_p, h_dt, w_dt, o_dt, use_norm, h_buffers):
    in_l = _round_up(in_feats, 128)
    out_l = _round_up(out_p, 128)
    est = h_buffers * tile_n * in_l * _itemsize(h_dt)          # h tiles
    est += 2 * tile_n * out_l * _itemsize(o_dt)                # out tiles
    est += _round_up(in_feats, _packed_sublane(w_dt)) * out_l * _itemsize(w_dt)  # resident W
    est += 8 * out_l * _itemsize(w_dt)                         # bias (sublane-padded)
    est += tile_n * out_l * 4                                  # f32 epilogue intermediate
    if use_norm:
        est += 2 * tile_n * 128 * _itemsize(h_dt)              # norm tile (lane-padded)
    return est + (2 << 20)                                     # headroom


def _vmem_est_ksplit(tile_n, tile_k, out_p, h_dt, w_dt, o_dt, use_norm, h_buffers):
    k_l = _round_up(tile_k, 128)
    out_l = _round_up(out_p, 128)
    est = h_buffers * tile_n * k_l * _itemsize(h_dt)           # h tiles
    est += 2 * tile_k * out_l * _itemsize(w_dt)                # W tiles (double-buffered)
    est += 8 * out_l * _itemsize(w_dt)                         # bias
    est += 2 * tile_n * out_l * _itemsize(o_dt)                # out tiles
    est += tile_n * out_l * 4                                  # f32 accumulator scratch
    if use_norm:
        est += 2 * tile_n * 128 * _itemsize(h_dt)
    return est + (2 << 20)


def _pick_tile_k(in_feats, tile_k):
    """Pick a K tile that is a multiple of 128 and divides in_feats."""
    if tile_k is not None:
        if in_feats % tile_k == 0 and (tile_k % 128 == 0 or tile_k == in_feats):
            return int(tile_k)
        return None
    for cand in (512, 384, 256, 128):
        if in_feats % cand == 0:
            return cand
    return None


# --------------------------------------------------------------------------- #
# kernels
# --------------------------------------------------------------------------- #
def _resident_kernel(*refs, relu, use_norm):
    # refs: h, [norm], W(resident), b(resident), out
    if use_norm:
        h_ref, norm_ref, w_ref, b_ref, o_ref = refs
    else:
        h_ref, w_ref, b_ref, o_ref = refs
    out = jnp.dot(h_ref[...], w_ref[...], preferred_element_type=jnp.float32)  # MXU, f32 acc
    if use_norm:
        out = out * norm_ref[...].astype(jnp.float32)   # row-scale on the f32 result
    out = out + b_ref[...].astype(jnp.float32)
    if relu:
        out = jnp.maximum(out, 0.0)
    o_ref[...] = out.astype(o_ref.dtype)


def _ksplit_kernel(*refs, relu, use_norm):
    # refs: h, [norm], W(k-tile), b(resident), out, acc(scratch)
    if use_norm:
        h_ref, norm_ref, w_ref, b_ref, o_ref, acc_ref = refs
    else:
        h_ref, w_ref, b_ref, o_ref, acc_ref = refs
    k = pl.program_id(1)

    @pl.when(k == 0)
    def _():
        acc_ref[...] = jnp.zeros_like(acc_ref)

    acc_ref[...] += jnp.dot(h_ref[...], w_ref[...], preferred_element_type=jnp.float32)

    @pl.when(k == pl.num_programs(1) - 1)
    def _():
        out = acc_ref[...]
        if use_norm:
            out = out * norm_ref[...].astype(jnp.float32)
        out = out + b_ref[...].astype(jnp.float32)
        if relu:
            out = jnp.maximum(out, 0.0)
        o_ref[...] = out.astype(o_ref.dtype)


# --------------------------------------------------------------------------- #
# wrapper
# --------------------------------------------------------------------------- #
def prepare_params(w, b, *, pad_lanes=None):
    """Pad Linear params to a lane-dense feature width ONCE (cache the result).

    w: [in_feats, out_feats]   (torch Linear weight pre-transposed to [in, out])
    b: [out_feats]
    Returns (w_padded [in, out_p], b_padded [1, out_p], out_feats).
    """
    out_feats = w.shape[1]
    if pad_lanes is None:
        # Narrow heads (< 128) keep masked stores: padding them would double the
        # output writeback and add a strip-slice pass.  Benchmark both if unsure.
        pad_lanes = (out_feats % 128 != 0) and out_feats >= 128
    out_p = _round_up(out_feats, 128) if pad_lanes else out_feats
    if out_p != out_feats:
        w = jnp.pad(w, ((0, 0), (0, out_p - out_feats)))
        b = jnp.pad(b, (0, out_p - out_feats))
    return w, b.reshape(1, out_p), out_feats


def node_update(h, w_p, b_p, out_feats=None, norm=None, *, test=False,
                activation="relu", tile_n=1024, tile_k=None, h_buffers=2,
                max_resident_w_bytes=None):
    """GCN NodeUpdate forward.

    h:     [N, in_feats]   node features (f32 or bf16)
    w_p:   [in_feats, out_p] weight from prepare_params (possibly lane-padded)
    b_p:   [1, out_p]        bias from prepare_params
    norm:  [N, 1] degree normalization, used only when test=True
    """
    N, in_feats = h.shape
    out_p = w_p.shape[1]
    if out_feats is None:
        out_feats = out_p
    relu = (activation == "relu")
    use_norm = bool(test)
    if use_norm and norm is None:
        raise ValueError("test=True requires a norm array of shape [N, 1]")

    # ---- row tiling: no padding, ragged last tile is masked by Pallas ---------
    sub = _packed_sublane(h.dtype)
    tile_n = max(sub, (int(tile_n) // sub) * sub)       # packed-sublane multiple
    tile_n = min(tile_n, _round_up(N, sub))             # never bigger than problem
    if N > 2 * sub:
        # >= 2 grid steps so both v7x TensorCores get work (near-free on 1-TC parts)
        tile_n = min(tile_n, _round_up(pl.cdiv(N, 2), sub))
    grid_n = pl.cdiv(N, tile_n)

    # ---- VMEM budget / resident-W gating ---------------------------------------
    vmem_cap = _tpu_vmem_capacity()
    cap = max(32 << 20, vmem_cap - (16 << 20))          # generation-aware scoped cap
    w_bytes = w_p.size * _itemsize(w_p.dtype)
    if max_resident_w_bytes is None:
        max_resident_w_bytes = max(8 << 20, cap - (16 << 20))

    resident_est = _vmem_est_resident(tile_n, in_feats, out_p, h.dtype, w_p.dtype,
                                      h.dtype, use_norm, h_buffers)
    want_ksplit = (w_bytes > max_resident_w_bytes) or (resident_est > cap)
    tk = _pick_tile_k(in_feats, tile_k) if want_ksplit else None
    use_ksplit = want_ksplit and tk is not None
    # TODO(synk): if W is too large for VMEM and in_feats is not a multiple of 128,
    # pad in_feats at parameter-setup time so the K-split path can engage.

    norm_spec_1 = pl.BlockSpec((tile_n, 1), lambda i: (i, 0),
                               pipeline_mode=pl.Buffered(h_buffers))
    norm_spec_2 = pl.BlockSpec((tile_n, 1), lambda i, k: (i, 0))

    if use_ksplit:
        grid = (grid_n, in_feats // tk)
        h_spec = pl.BlockSpec((tile_n, tk), lambda i, k: (i, k),
                              pipeline_mode=pl.Buffered(h_buffers))
        w_spec = pl.BlockSpec((tk, out_p), lambda i, k: (k, 0))
        b_spec = pl.BlockSpec((1, out_p), lambda i, k: (0, 0),
                              pipeline_mode=pl.Buffered(1))
        out_spec = pl.BlockSpec((tile_n, out_p), lambda i, k: (i, 0))
        scratch = [pltpu.VMEM((tile_n, out_p), jnp.float32)]
        semantics = ("parallel", "arbitrary")
        kernel = functools.partial(_ksplit_kernel, relu=relu, use_norm=use_norm)
        norm_spec = norm_spec_2
        est = _vmem_est_ksplit(tile_n, tk, out_p, h.dtype, w_p.dtype, h.dtype,
                               use_norm, h_buffers)
    else:
        grid = (grid_n,)
        h_spec = pl.BlockSpec((tile_n, in_feats), lambda i: (i, 0),
                              pipeline_mode=pl.Buffered(h_buffers))
        # constant index_map => resident; single-buffer to save VMEM
        w_spec = pl.BlockSpec((in_feats, out_p), lambda i: (0, 0),
                              pipeline_mode=pl.Buffered(1))
        b_spec = pl.BlockSpec((1, out_p), lambda i: (0, 0),
                              pipeline_mode=pl.Buffered(1))
        out_spec = pl.BlockSpec((tile_n, out_p), lambda i: (i, 0))
        scratch = []
        semantics = ("parallel",)
        kernel = functools.partial(_resident_kernel, relu=relu, use_norm=use_norm)
        norm_spec = norm_spec_1
        est = resident_est

    if use_norm:
        in_specs = [h_spec, norm_spec, w_spec, b_spec]
        args = (h, norm, w_p, b_p)
    else:
        in_specs = [h_spec, w_spec, b_spec]
        args = (h, w_p, b_p)

    vmem_limit = int(min(max(int(est * 1.25), 32 << 20), cap))

    bytes_accessed = (h.size * _itemsize(h.dtype)
                      + (norm.size * _itemsize(norm.dtype) if use_norm else 0)
                      + w_p.size * _itemsize(w_p.dtype)
                      + b_p.size * _itemsize(b_p.dtype)
                      + N * out_p * _itemsize(h.dtype))
    cost = pl.CostEstimate(flops=2 * N * in_feats * out_p,
                           transcendentals=0,
                           bytes_accessed=bytes_accessed)

    out = pl.pallas_call(
        kernel,
        out_shape=jax.ShapeDtypeStruct((N, out_p), h.dtype),
        grid_spec=pltpu.PrefetchScalarGridSpec(
            num_scalar_prefetch=0,
            grid=grid,
            in_specs=in_specs,
            out_specs=out_spec,
            scratch_shapes=scratch,
        ),
        compiler_params=pltpu.CompilerParams(
            dimension_semantics=semantics,
            vmem_limit_bytes=vmem_limit),
        cost_estimate=cost,
    )(*args)

    if out_p != out_feats:
        out = out[:, :out_feats]     # strip lane padding (only when padded)
    return out


# --------------------------------------------------------------------------- #
# reference + tests
# --------------------------------------------------------------------------- #
def node_update_ref(h, w, b, norm=None, *, test=False, activation="relu"):
    if test:
        h = h * norm
    out = h @ w + b
    if activation == "relu":
        out = jnp.maximum(out, 0.0)
    return out


def _make_inputs(key, N, in_feats, out_feats):
    k_h, k_n, k_w, k_b = jax.random.split(key, 4)
    h = jax.random.normal(k_h, (N, in_feats), dtype=jnp.float32)
    norm = jax.random.uniform(k_n, (N, 1), dtype=jnp.float32, minval=0.1, maxval=1.0)
    w = (jax.random.normal(k_w, (in_feats, out_feats), dtype=jnp.float32)
         * (1.0 / jnp.sqrt(in_feats)))
    b = jax.random.normal(k_b, (out_feats,), dtype=jnp.float32) * 0.01
    return h, norm, w, b


if __name__ == "__main__":
    key = jax.random.PRNGKey(0)
    keys = jax.random.split(key, 4)

    # A) typical small GCN layer, narrow out_feats -> masked-store output path
    h, norm, w, b = _make_inputs(keys[0], N=256, in_feats=128, out_feats=64)
    w_p, b_p, of = prepare_params(w, b)
    out = jax.block_until_ready(node_update(h, w_p, b_p, of, norm, test=True))
    assert jnp.allclose(out, node_update_ref(h, w, b, norm, test=True),
                        atol=1e-4, rtol=1e-4), "A: test-mode mismatch"
    out = jax.block_until_ready(node_update(h, w_p, b_p, of, test=False))
    assert jnp.allclose(out, node_update_ref(h, w, b, test=False),
                        atol=1e-4, rtol=1e-4), "A: train-mode mismatch"

    # B) ragged N (no wrapper padding; Pallas masks the last tile)
    h, norm, w, b = _make_inputs(keys[1], N=200, in_feats=128, out_feats=64)
    w_p, b_p, of = prepare_params(w, b)
    out = jax.block_until_ready(node_update(h, w_p, b_p, of, norm, test=True))
    assert jnp.allclose(out, node_update_ref(h, w, b, norm, test=True),
                        atol=1e-4, rtol=1e-4), "B: ragged-N mismatch"

    # C) forced K-split path (resident-W fallback for v7x-sized VMEM)
    h, norm, w, b = _make_inputs(keys[2], N=64, in_feats=256, out_feats=64)
    w_p, b_p, of = prepare_params(w, b)
    out = jax.block_until_ready(node_update(h, w_p, b_p, of, norm, test=True,
                                            tile_k=128, max_resident_w_bytes=0))
    assert jnp.allclose(out, node_update_ref(h, w, b, norm, test=True),
                        atol=1e-4, rtol=1e-4), "C: K-split mismatch"

    # D) lane-padded output path (out_feats >= 128 and not a multiple of 128)
    h, norm, w, b = _make_inputs(keys[3], N=128, in_feats=128, out_feats=192)
    w_p, b_p, of = prepare_params(w, b)
    out = jax.block_until_ready(node_update(h, w_p, b_p, of, test=False))
    assert jnp.allclose(out, node_update_ref(h, w, b, test=False),
                        atol=1e-4, rtol=1e-4), "D: lane-padded output mismatch"

    print("KERNEL_OK")
</pallas_src>

<mosaic_0001>
module attributes {stable_mosaic.version = 11 : i64} {
  func.func @_resident_kernel(%arg0: i32, %arg1: memref<128x128xf32, #tpu.memory_space<vmem>>, %arg2: memref<128x1xf32, #tpu.memory_space<vmem>>, %arg3: memref<128x64xf32, #tpu.memory_space<vmem>>, %arg4: memref<1x64xf32, #tpu.memory_space<vmem>>, %arg5: memref<128x64xf32, #tpu.memory_space<vmem>>) attributes {dimension_semantics = [#tpu.dimension_semantics<parallel>], iteration_bounds = array<i64: 2>, scalar_prefetch = 0 : i64, scratch_operands = 0 : i64, tpu.core_type = #tpu.core_type<tc>, window_params = [{pipeline_mode = #tpu.pipeline_mode<double_buffered>, transform_indices = @transform_0, window_bounds = array<i64: 128, 128>}, {pipeline_mode = #tpu.pipeline_mode<double_buffered>, transform_indices = @transform_1, window_bounds = array<i64: 128, 1>}, {pipeline_mode = #tpu.pipeline_mode<synchronous>, transform_indices = @transform_2, window_bounds = array<i64: 128, 64>}, {pipeline_mode = #tpu.pipeline_mode<synchronous>, transform_indices = @transform_3, window_bounds = array<i64: 1, 64>}, {transform_indices = @transform_4, window_bounds = array<i64: 128, 64>}]} {
    %c0 = arith.constant 0 : index
    %c0_0 = arith.constant 0 : index
    %0 = vector.load %arg1[%c0, %c0_0] : memref<128x128xf32, #tpu.memory_space<vmem>>, vector<128x128xf32>
    %c0_1 = arith.constant 0 : index
    %c0_2 = arith.constant 0 : index
    %1 = vector.load %arg3[%c0_1, %c0_2] : memref<128x64xf32, #tpu.memory_space<vmem>>, vector<128x64xf32>
    %cst = arith.constant dense<0.000000e+00> : vector<128x64xf32>
    %2 = tpu.matmul %0, %1, %cst {dimension_numbers = #tpu.dot_dimension_numbers<[1], [0], [0], [1], [0, 0, 1, 1], [], []>} : vector<128x128xf32>, vector<128x64xf32>, vector<128x64xf32> -> vector<128x64xf32>
    %c0_3 = arith.constant 0 : index
    %c0_4 = arith.constant 0 : index
    %3 = vector.load %arg2[%c0_3, %c0_4] : memref<128x1xf32, #tpu.memory_space<vmem>>, vector<128x1xf32>
    %4 = vector.broadcast %3 : vector<128x1xf32> to vector<128x64xf32>
    %5 = arith.mulf %2, %4 : vector<128x64xf32>
    %c0_5 = arith.constant 0 : index
    %c0_6 = arith.constant 0 : index
    %6 = vector.load %arg4[%c0_5, %c0_6] : memref<1x64xf32, #tpu.memory_space<vmem>>, vector<1x64xf32>
    %7 = vector.broadcast %6 : vector<1x64xf32> to vector<128x64xf32>
    %8 = arith.addf %5, %7 : vector<128x64xf32>
    %cst_7 = arith.constant 0.000000e+00 : f32
    %9 = vector.broadcast %cst_7 : f32 to vector<128x64xf32>
    %10 = arith.maximumf %8, %9 : vector<128x64xf32>
    %c0_8 = arith.constant 0 : index
    %c0_9 = arith.constant 0 : index
    %11 = vector.load %arg5[%c0_8, %c0_9] : memref<128x64xf32, #tpu.memory_space<vmem>>, vector<128x64xf32>
    tpu.vector_store %arg5[%c0_8, %c0_9], %10 {strides = array<i32>} : memref<128x64xf32, #tpu.memory_space<vmem>>, vector<128x64xf32>,
    return
  }
  func.func @transform_0(%arg0: i32) -> (i32, i32) {
    %c0_i32 = arith.constant 0 : i32
    %c0_i32_0 = arith.constant 0 : i32
    return %arg0, %c0_i32 : i32, i32
  }
  func.func @transform_1(%arg0: i32) -> (i32, i32) {
    %c0_i32 = arith.constant 0 : i32
    %c0_i32_0 = arith.constant 0 : i32
    return %arg0, %c0_i32 : i32, i32
  }
  func.func @transform_2(%arg0: i32) -> (i32, i32) {
    %c0_i32 = arith.constant 0 : i32
    %c0_i32_0 = arith.constant 0 : i32
    %c0_i32_1 = arith.constant 0 : i32
    return %c0_i32, %c0_i32_0 : i32, i32
  }
  func.func @transform_3(%arg0: i32) -> (i32, i32) {
    %c0_i32 = arith.constant 0 : i32
    %c0_i32_0 = arith.constant 0 : i32
    %c0_i32_1 = arith.constant 0 : i32
    return %c0_i32, %c0_i32_0 : i32, i32
  }
  func.func @transform_4(%arg0: i32) -> (i32, i32) {
    %c0_i32 = arith.constant 0 : i32
    %c0_i32_0 = arith.constant 0 : i32
    return %arg0, %c0_i32 : i32, i32
  }
}

</mosaic_0001>

<llo_original>
// kernel: tpu_custom_call.1
$region0: #{tpu_custom_call.1}
  #allocation0 [shape = 'u32[]', space=smem, size = 0x4, offset = 0x4, fixed_abs, tag = 'smem constant byte address 0x4 - core index']
  #allocation1 [shape = 'u32[144,128]{1,0:T(1,128)}', space=vmem, size = 0x12000, scoped, tag = 'internal scratch']
  %s0 = inlined_call_operand.vmem [shape: f32[256,128], index: 0, kind: input, shape index: {}]
  %s1 = inlined_call_operand.vmem [shape: f32[256,1], index: 1, kind: input, shape index: {}]
  %s2 = inlined_call_operand.vmem [shape: f32[128,64], index: 2, kind: input, shape index: {}]
  %s3 = inlined_call_operand.vmem [shape: f32[1,64], index: 3, kind: input, shape index: {}]
  %s4 = inlined_call_operand.vmem [shape: f32[256,64], index: 4, kind: output, shape index: {}]
  %s5 = sld [smem:[#allocation0]]
  $region49: #{tpu_custom_call.1} parent=0
    _
  %s7 = ssub.s32 1, %s5
  %s8 = scalar_select 0, %s7, %s5
  loop: start=0, step=1, limit=4
  $region2: #{tpu_custom_call.1} parent=0 // loop_pre_header
    _
  $region3: #{tpu_custom_call.1} parent=0 // loop_header
    %s10 = sphi 0, %s14
    %p11 = scmp.ge.s32.totalorder %s10, 4
    %s20 = sphi 0, %s22
    %s23 = sphi 0, %s20
    %s24 = sphi 0, %s23
    %s40 = sphi 0, %s24
    %s46 = sphi 0, %s48
    %s49 = sphi 0, %s46
    %s50 = sphi 0, %s49
    %s66 = sphi 0, %s50
    %s70 = sphi 0, %s70
    %s72 = sphi 0, %s70
    %s73 = sphi 0, %s72
    %s87 = sphi 0, %s73
    %s91 = sphi 0, %s91
    %s93 = sphi 0, %s91
    %s94 = sphi 0, %s93
    %s108 = sphi 0, %s94
    %s114 = sphi 0, %s116
    %s117 = sphi 0, %s114
    %s118 = sphi 0, %s117
    %s134 = sphi 0, %s118
  $region4: #{tpu_custom_call.1} parent=0 // loop_header_branch
    %13 = sbr.rel (%p11) target = $region8
  $region5: #{tpu_custom_call.1} parent=0 // loop_body
    %s15 = ssub.s32 %s10, 1
    %s16 = ssub.s32 %s10, 2
    %s17 = sadd.s32 %s10, 1
    %s18 = ssub.s32 %s10, %s17
    %p19 = scmp.eq.s32.totalorder %s18, 0
    %s21 = sadd.s32 %s20, 1
    %s22 = scalar_select %p19, %s20, %s21
    %p25 = pneg %p19
    %p26 = scmp.eq.s32.totalorder %s10, 1
    %p27 = por %p25, %p26
    %p28 = scmp.ne.s32.totalorder %s20, %s23
    %p29 = scmp.eq.s32.totalorder %s10, 0
    %p30 = por %p28, %p29
    %p31 = scmp.ne.s32.totalorder %s20, %s23
    %p32 = scmp.eq.s32.totalorder %s15, 1
    %p33 = por %p31, %p32
    %p34 = scmp.ne.s32.totalorder %s23, %s24
    %p35 = scmp.eq.s32.totalorder %s15, 0
    %p36 = por %p34, %p35
    %p37 = scmp.ne.s32.totalorder %s23, %s24
    %p38 = scmp.eq.s32.totalorder %s16, 1
    %p39 = por %p37, %p38
    %p41 = scmp.ne.s32.totalorder %s24, %s40
    %p42 = scmp.eq.s32.totalorder %s16, 0
    %p43 = por %p41, %p42
    %s44 = ssub.s32 %s10, %s17
    %p45 = scmp.eq.s32.totalorder %s44, 0
    %s47 = sadd.s32 %s46, 1
    %s48 = scalar_select %p45, %s46, %s47
    %p51 = pneg %p45
    %p52 = scmp.eq.s32.totalorder %s10, 1
    %p53 = por %p51, %p52
    %p54 = scmp.ne.s32.totalorder %s46, %s49
    %p55 = scmp.eq.s32.totalorder %s10, 0
    %p56 = por %p54, %p55
    %p57 = scmp.ne.s32.totalorder %s46, %s49
    %p58 = scmp.eq.s32.totalorder %s15, 1
    %p59 = por %p57, %p58
    %p60 = scmp.ne.s32.totalorder %s49, %s50
    %p61 = scmp.eq.s32.totalorder %s15, 0
    %p62 = por %p60, %p61
    %p63 = scmp.ne.s32.totalorder %s49, %s50
    %p64 = scmp.eq.s32.totalorder %s16, 1
    %p65 = por %p63, %p64
    %p67 = scmp.ne.s32.totalorder %s50, %s66
    %p68 = scmp.eq.s32.totalorder %s16, 0
    %p69 = por %p67, %p68
    %s71 = sadd.s32 %s70, 1
    %p74 = scmp.eq.s32.totalorder %s10, 1
    %p75 = scmp.ne.s32.totalorder %s70, %s72
    %p76 = scmp.eq.s32.totalorder %s10, 0
    %p77 = por %p75, %p76
    %p78 = scmp.ne.s32.totalorder %s70, %s72
    %p79 = scmp.eq.s32.totalorder %s15, 1
    %p80 = por %p78, %p79
    %p81 = scmp.ne.s32.totalorder %s72, %s73
    %p82 = scmp.eq.s32.totalorder %s15, 0
    %p83 = por %p81, %p82
    %p84 = scmp.ne.s32.totalorder %s72, %s73
    %p85 = scmp.eq.s32.totalorder %s16, 1
    %p86 = por %p84, %p85
    %p88 = scmp.ne.s32.totalorder %s73, %s87
    %p89 = scmp.eq.s32.totalorder %s16, 0
    %p90 = por %p88, %p89
    %s92 = sadd.s32 %s91, 1
    %p95 = scmp.eq.s32.totalorder %s10, 1
    %p96 = scmp.ne.s32.totalorder %s91, %s93
    %p97 = scmp.eq.s32.totalorder %s10, 0
    %p98 = por %p96, %p97
    %p99 = scmp.ne.s32.totalorder %s91, %s93
    %p100 = scmp.eq.s32.totalorder %s15, 1
    %p101 = por %p99, %p100
    %p102 = scmp.ne.s32.totalorder %s93, %s94
    %p103 = scmp.eq.s32.totalorder %s15, 0
    %p104 = por %p102, %p103
    %p105 = scmp.ne.s32.totalorder %s93, %s94
    %p106 = scmp.eq.s32.totalorder %s16, 1
    %p107 = por %p105, %p106
    %p109 = scmp.ne.s32.totalorder %s94, %s108
    %p110 = scmp.eq.s32.totalorder %s16, 0
    %p111 = por %p109, %p110
    %s112 = ssub.s32 %s10, %s17
    %p113 = scmp.eq.s32.totalorder %s112, 0
    %s115 = sadd.s32 %s114, 1
    %s116 = scalar_select %p113, %s114, %s115
    %p119 = pneg %p113
    %p120 = scmp.eq.s32.totalorder %s10, 1
    %p121 = por %p119, %p120
    %p122 = scmp.ne.s32.totalorder %s114, %s117
    %p123 = scmp.eq.s32.totalorder %s10, 0
    %p124 = por %p122, %p123
    %p125 = scmp.ne.s32.totalorder %s114, %s117
    %p126 = scmp.eq.s32.totalorder %s15, 1
    %p127 = por %p125, %p126
    %p128 = scmp.ne.s32.totalorder %s117, %s118
    %p129 = scmp.eq.s32.totalorder %s15, 0
    %p130 = por %p128, %p129
    %p131 = scmp.ne.s32.totalorder %s117, %s118
    %p132 = scmp.eq.s32.totalorder %s16, 1
    %p133 = por %p131, %p132
    %p135 = scmp.ne.s32.totalorder %s118, %s134
    %p136 = scmp.eq.s32.totalorder %s16, 0
    %p137 = por %p135, %p136
    %p138 = scmp.le.s32.totalorder 1, %s10
    %p139 = scmp.lt.s32.totalorder %s10, 3
    %p140 = pnand %p138, %p139
    %p141 = pneg %p140
    // Predicated region
    $region9: #{tpu_custom_call.1} parent=5 // pred_check
      _
    $region10: #{tpu_custom_call.1} parent=5 // pred_check_branch
      %143 = sbr.rel (%p140) target = $region12
    $region11: #{tpu_custom_call.1} parent=5 // pred_region
      %s144 = ssub.s32 %s10, 1
      // Predicated region
      $region13: #{tpu_custom_call.1} parent=11 // pred_check
        %p145 = pneg %p83
      $region14: #{tpu_custom_call.1} parent=11 // pred_check_branch
        %147 = sbr.rel (%p145) target = $region16
      $region15: #{tpu_custom_call.1} parent=11 // pred_region
        _
      $region16: #{tpu_custom_call.1} parent=11 // pred_fallthru
        _
      // Predicated region
      $region17: #{tpu_custom_call.1} parent=11 // pred_check
        %p148 = pneg %p104
      $region18: #{tpu_custom_call.1} parent=11 // pred_check_branch
        %150 = sbr.rel (%p148) target = $region20
      $region19: #{tpu_custom_call.1} parent=11 // pred_region
        _
      $region20: #{tpu_custom_call.1} parent=11 // pred_fallthru
        _
    $region12: #{tpu_custom_call.1} parent=5 // pred_fallthru
      _
    %p151 = scmp.lt.s32.totalorder %s10, 2
    // Predicated region
    $region21: #{tpu_custom_call.1} parent=5 // pred_check
      %p152 = pneg %p151
    $region22: #{tpu_custom_call.1} parent=5 // pred_check_branch
      %154 = sbr.rel (%p152) target = $region24
    $region23: #{tpu_custom_call.1} parent=5 // pred_region
      // Predicated region
      $region25: #{tpu_custom_call.1} parent=23 // pred_check
        %p155 = pneg %p30
      $region26: #{tpu_custom_call.1} parent=23 // pred_check_branch
        %157 = sbr.rel (%p155) target = $region28
      $region27: #{tpu_custom_call.1} parent=23 // pred_region
        %s158 = smul.u32 16, %s10
        %p159 = scmp.lt.s32.totalorder %s158, 31
        %s160 = scalar_select %p159, %s158, 31
        %s161 = smul.addr %s160, 8
        %s162 = scalar_lea.vmem %s0, %s161
        %s163 = smul.u32 16, %s10
      $region28: #{tpu_custom_call.1} parent=23 // pred_fallthru
        _
      // Predicated region
      $region29: #{tpu_custom_call.1} parent=23 // pred_check
        %p164 = pneg %p56
      $region30: #{tpu_custom_call.1} parent=23 // pred_check_branch
        %166 = sbr.rel (%p164) target = $region32
      $region31: #{tpu_custom_call.1} parent=23 // pred_region
        %s167 = smul.u32 16, %s10
        %p168 = scmp.lt.s32.totalorder %s167, 31
        %s169 = scalar_select %p168, %s167, 31
        %s170 = smul.addr %s169, 8
        %s171 = scalar_lea.vmem %s1, %s170
        %s172 = smul.u32 16, %s10
      $region32: #{tpu_custom_call.1} parent=23 // pred_fallthru
        _
    $region24: #{tpu_custom_call.1} parent=5 // pred_fallthru
      _
    %p173 = scmp.le.s32.totalorder 1, %s10
    %p174 = scmp.lt.s32.totalorder %s10, 3
    %p175 = pnand %p173, %p174
    %p176 = pneg %p175
    // Predicated region
    $region33: #{tpu_custom_call.1} parent=5 // pred_check
      _
    $region34: #{tpu_custom_call.1} parent=5 // pred_check_branch
      %178 = sbr.rel (%p175) target = $region36
    $region35: #{tpu_custom_call.1} parent=5 // pred_region
      %s179 = ssub.s32 %s10, 1
      %s180 = smul.u32 16, %s15
      %p181 = scmp.lt.s32.totalorder %s180, 31
      %s182 = scalar_select %p181, %s180, 31
      %s183 = smul.addr %s182, 8
      %s184 = scalar_lea.vmem %s0, %s183
      %p185 = pneg %p36
      %p186 = pneg %p33
      %s187 = smul.u32 16, %s15
      %p188 = scmp.lt.s32.totalorder %s187, 31
      %s189 = scalar_select %p188, %s187, 31
      %s190 = smul.addr %s189, 8
      %s191 = scalar_lea.vmem %s1, %s190
      %p192 = pneg %p62
      %p193 = pneg %p59
      %p194 = pneg %p83
      %p195 = pneg %p80
      %p196 = pneg %p104
      %p197 = pneg %p101
      %p198 = pneg %p130
      %p199 = pneg %p127
      %s200 = smul.u32 16, %s15
      %p201 = scmp.lt.s32.totalorder %s200, 31
      %s202 = scalar_select %p201, %s200, 31
      %s203 = smul.addr %s202, 8
      %s204 = scalar_lea.vmem %s4, %s203
      %s205 = smul.u32 16, %s15
      %p206 = scmp.lt.s32.totalorder %s205, 31
      %s207 = scalar_select %p206, %s205, 31
      %s208 = smul.addr %s207, 8
      %s209 = scalar_lea.vmem %s0, %s208
      %s210 = smul.u32 16, %s15
      %s211 = smul.u32 16, %s15
      %p212 = scmp.lt.s32.totalorder %s211, 31
      %s213 = scalar_select %p212, %s211, 31
      %s214 = smul.addr %s213, 8
      %s215 = scalar_lea.vmem %s1, %s214
      %s216 = smul.u32 16, %s15
      %s217 = smul.u32 16, %s15
      %p218 = scmp.lt.s32.totalorder %s217, 31
      %s219 = scalar_select %p218, %s217, 31
      %s220 = smul.addr %s219, 8
      %s221 = scalar_lea.vmem %s4, %s220
      %s222 = smul.u32 16, %s15
      %v223 = vld [vmem:[%s209] sm:$0xff]
      %v224 = vld [vmem:[%s209 + $0x8] sm:$0xff]
      %v225 = vld [vmem:[%s209 + $0x10] sm:$0xff]
      %v226 = vld [vmem:[%s209 + $0x18] sm:$0xff]
      %v227 = vld [vmem:[%s209 + $0x20] sm:$0xff]
      %v228 = vld [vmem:[%s209 + $0x28] sm:$0xff]
      %v229 = vld [vmem:[%s209 + $0x30] sm:$0xff]
      %v230 = vld [vmem:[%s209 + $0x38] sm:$0xff]
      %v231 = vld [vmem:[%s209 + $0x40] sm:$0xff]
      %v232 = vld [vmem:[%s209 + $0x48] sm:$0xff]
      %v233 = vld [vmem:[%s209 + $0x50] sm:$0xff]
      %v234 = vld [vmem:[%s209 + $0x58] sm:$0xff]
      %v235 = vld [vmem:[%s209 + $0x60] sm:$0xff]
      %v236 = vld [vmem:[%s209 + $0x68] sm:$0xff]
      %v237 = vld [vmem:[%s209 + $0x70] sm:$0xff]
      %v238 = vld [vmem:[%s209 + $0x78] sm:$0xff]
      %v239 = vld [vmem:[%s2] sm:$0xff]
      %v240 = vld [vmem:[%s2 + $0x8] sm:$0xff]
      %v241 = vld [vmem:[%s2 + $0x10] sm:$0xff]
      %v242 = vld [vmem:[%s2 + $0x18] sm:$0xff]
      %v243 = vld [vmem:[%s2 + $0x20] sm:$0xff]
      %v244 = vld [vmem:[%s2 + $0x28] sm:$0xff]
      %v245 = vld [vmem:[%s2 + $0x30] sm:$0xff]
      %v246 = vld [vmem:[%s2 + $0x38] sm:$0xff]
      %v247 = vld [vmem:[%s2 + $0x40] sm:$0xff]
      %v248 = vld [vmem:[%s2 + $0x48] sm:$0xff]
      %v249 = vld [vmem:[%s2 + $0x50] sm:$0xff]
      %v250 = vld [vmem:[%s2 + $0x58] sm:$0xff]
      %v251 = vld [vmem:[%s2 + $0x60] sm:$0xff]
      %v252 = vld [vmem:[%s2 + $0x68] sm:$0xff]
      %v253 = vld [vmem:[%s2 + $0x70] sm:$0xff]
      %v254 = vld [vmem:[%s2 + $0x78] sm:$0xff]
      %255 = vmatprep.subr.mxu0 0.0
      %256 = vmatpush1.msra.mxu0 %v254
      %257 = vmatprep.subr.mxu0 0.0
      %258 = vmatpush1.msra.mxu0 %v253
      %259 = vmatprep.subr.mxu0 0.0
      %260 = vmatpush1.msra.mxu0 %v252
      %261 = vmatprep.subr.mxu0 0.0
      %262 = vmatpush1.msra.mxu0 %v251
      %263 = vmatprep.subr.mxu0 0.0
      %264 = vmatpush1.msra.mxu0 %v250
      %265 = vmatprep.subr.mxu0 0.0
      %266 = vmatpush1.msra.mxu0 %v249
      %267 = vmatprep.subr.mxu0 0.0
      %268 = vmatpush1.msra.mxu0 %v248
      %269 = vmatprep.subr.mxu0 0.0
      %270 = vmatpush1.msra.mxu0 %v247
      %271 = vmatprep.subr.mxu0 0.0
      %272 = vmatpush1.msra.mxu0 %v246
      %273 = vmatprep.subr.mxu0 0.0
      %274 = vmatpush1.msra.mxu0 %v245
      %275 = vmatprep.subr.mxu0 0.0
      %276 = vmatpush1.msra.mxu0 %v244
      %277 = vmatprep.subr.mxu0 0.0
      %278 = vmatpush1.msra.mxu0 %v243
      %279 = vmatprep.subr.mxu0 0.0
      %280 = vmatpush1.msra.mxu0 %v242
      %281 = vmatprep.subr.mxu0 0.0
      %282 = vmatpush1.msra.mxu0 %v241
      %283 = vmatprep.subr.mxu0 0.0
      %284 = vmatpush1.msra.mxu0 %v240
      %285 = vmatprep.subr.mxu0 0.0
      %286 = vmatpush1.msra.mxu0 %v239
      %287 = vmatprep.subr.mxu0 0.0
      %288 = vmatpush2.msra.mxu0 0.0
      %289 = vmatprep.subr.mxu0 0.0
      %290 = vmatpush2.msra.mxu0 0.0
      %291 = vmatprep.subr.mxu0 0.0
      %292 = vmatpush2.msra.mxu0 0.0
      %293 = vmatprep.subr.mxu0 0.0
      %294 = vmatpush2.msra.mxu0 0.0
      %295 = vmatprep.subr.mxu0 0.0
      %296 = vmatpush2.msra.mxu0 0.0
      %297 = vmatprep.subr.mxu0 0.0
      %298 = vmatpush2.msra.mxu0 0.0
      %299 = vmatprep.subr.mxu0 0.0
      %300 = vmatpush2.msra.mxu0 0.0
      %301 = vmatprep.subr.mxu0 0.0
      %302 = vmatpush2.msra.mxu0 0.0
      %303 = vmatprep.subr.mxu0 0.0
      %304 = vmatpush2.msra.mxu0 0.0
      %305 = vmatprep.subr.mxu0 0.0
      %306 = vmatpush2.msra.mxu0 0.0
      %307 = vmatprep.subr.mxu0 0.0
      %308 = vmatpush2.msra.mxu0 0.0
      %309 = vmatprep.subr.mxu0 0.0
      %310 = vmatpush2.msra.mxu0 0.0
      %311 = vmatprep.subr.mxu0 0.0
      %312 = vmatpush2.msra.mxu0 0.0
      %313 = vmatprep.subr.mxu0 0.0
      %314 = vmatpush2.msra.mxu0 0.0
      %315 = vmatprep.subr.mxu0 0.0
      %316 = vmatpush2.msra.mxu0 0.0
      %317 = vmatprep.subr.mxu0 0.0
      %318 = vmatpush2.msra.mxu0 0.0
      %319 = vmatprep.mubr.f32.mxu0 0.0
      %320 = vmatmul.mubr.f32.gmra.mxu0 %v223
      %v321 = vpop.f32.mrf.mxu0
      %v322 = vadd.f32 0.0, %v321
      %v323 = vpop.f32.mrf.mxu0
      %324 = vmatprep.mubr.f32.mxu0 0.0
      %325 = vmatmul.mubr.f32.gmra.mxu0 %v224
      %v326 = vpop.f32.mrf.mxu0
      %v327 = vadd.f32 0.0, %v326
      %v328 = vpop.f32.mrf.mxu0
      %329 = vmatprep.mubr.f32.mxu0 0.0
      %330 = vmatmul.mubr.f32.gmra.mxu0 %v225
      %v331 = vpop.f32.mrf.mxu0
      %v332 = vadd.f32 0.0, %v331
      %v333 = vpop.f32.mrf.mxu0
      %334 = vmatprep.mubr.f32.mxu0 0.0
      %335 = vmatmul.mubr.f32.gmra.mxu0 %v226
      %v336 = vpop.f32.mrf.mxu0
      %v337 = vadd.f32 0.0, %v336
      %v338 = vpop.f32.mrf.mxu0
      %339 = vmatprep.mubr.f32.mxu0 0.0
      %340 = vmatmul.mubr.f32.gmra.mxu0 %v227
      %v341 = vpop.f32.mrf.mxu0
      %v342 = vadd.f32 0.0, %v341
      %v343 = vpop.f32.mrf.mxu0
      %344 = vmatprep.mubr.f32.mxu0 0.0
      %345 = vmatmul.mubr.f32.gmra.mxu0 %v228
      %v346 = vpop.f32.mrf.mxu0
      %v347 = vadd.f32 0.0, %v346
      %v348 = vpop.f32.mrf.mxu0
      %349 = vmatprep.mubr.f32.mxu0 0.0
      %350 = vmatmul.mubr.f32.gmra.mxu0 %v229
      %v351 = vpop.f32.mrf.mxu0
      %v352 = vadd.f32 0.0, %v351
      %v353 = vpop.f32.mrf.mxu0
      %354 = vmatprep.mubr.f32.mxu0 0.0
      %355 = vmatmul.mubr.f32.gmra.mxu0 %v230
      %v356 = vpop.f32.mrf.mxu0
      %v357 = vadd.f32 0.0, %v356
      %v358 = vpop.f32.mrf.mxu0
      %359 = vmatprep.mubr.f32.mxu0 0.0
      %360 = vmatmul.mubr.f32.gmra.mxu0 %v231
      %v361 = vpop.f32.mrf.mxu0
      %v362 = vadd.f32 0.0, %v361
      %v363 = vpop.f32.mrf.mxu0
      %364 = vmatprep.mubr.f32.mxu0 0.0
      %365 = vmatmul.mubr.f32.gmra.mxu0 %v232
      %v366 = vpop.f32.mrf.mxu0
      %v367 = vadd.f32 0.0, %v366
      %v368 = vpop.f32.mrf.mxu0
      %369 = vmatprep.mubr.f32.mxu0 0.0
      %370 = vmatmul.mubr.f32.gmra.mxu0 %v233
      %v371 = vpop.f32.mrf.mxu0
      %v372 = vadd.f32 0.0, %v371
      %v373 = vpop.f32.mrf.mxu0
      %374 = vmatprep.mubr.f32.mxu0 0.0
      %375 = vmatmul.mubr.f32.gmra.mxu0 %v234
      %v376 = vpop.f32.mrf.mxu0
      %v377 = vadd.f32 0.0, %v376
      %v378 = vpop.f32.mrf.mxu0
      %379 = vmatprep.mubr.f32.mxu0 0.0
      %380 = vmatmul.mubr.f32.gmra.mxu0 %v235
      %v381 = vpop.f32.mrf.mxu0
      %v382 = vadd.f32 0.0, %v381
      %v383 = vpop.f32.mrf.mxu0
      %384 = vmatprep.mubr.f32.mxu0 0.0
      %385 = vmatmul.mubr.f32.gmra.mxu0 %v236
      %v386 = vpop.f32.mrf.mxu0
      %v387 = vadd.f32 0.0, %v386
      %v388 = vpop.f32.mrf.mxu0
      %389 = vmatprep.mubr.f32.mxu0 0.0
      %390 = vmatmul.mubr.f32.gmra.mxu0 %v237
      %v391 = vpop.f32.mrf.mxu0
      %v392 = vadd.f32 0.0, %v391
      %v393 = vpop.f32.mrf.mxu0
      %394 = vmatprep.mubr.f32.mxu0 0.0
      %395 = vmatmul.mubr.f32.gmra.mxu0 %v238
      %v396 = vpop.f32.mrf.mxu0
      %v397 = vadd.f32 0.0, %v396
      %v398 = vpop.f32.mrf.mxu0
      %399 = vdwg.mxu0
      %v400 = vld [vmem:[%s215] sm:$0xff]
      %v401 = vld [vmem:[%s215 + $0x8] sm:$0xff]
      %v402 = vld [vmem:[%s215 + $0x10] sm:$0xff]
      %v403 = vld [vmem:[%s215 + $0x18] sm:$0xff]
      %v404 = vld [vmem:[%s215 + $0x20] sm:$0xff]
      %v405 = vld [vmem:[%s215 + $0x28] sm:$0xff]
      %v406 = vld [vmem:[%s215 + $0x30] sm:$0xff]
      %v407 = vld [vmem:[%s215 + $0x38] sm:$0xff]
      %v408 = vld [vmem:[%s215 + $0x40] sm:$0xff]
      %v409 = vld [vmem:[%s215 + $0x48] sm:$0xff]
      %v410 = vld [vmem:[%s215 + $0x50] sm:$0xff]
      %v411 = vld [vmem:[%s215 + $0x58] sm:$0xff]
      %v412 = vld [vmem:[%s215 + $0x60] sm:$0xff]
      %v413 = vld [vmem:[%s215 + $0x68] sm:$0xff]
      %v414 = vld [vmem:[%s215 + $0x70] sm:$0xff]
      %v415 = vld [vmem:[%s215 + $0x78] sm:$0xff]
      %417 = vset.pattern.permute.xlu0 0
      %418 = vperm.xlu0 %417, %v400
      %v419 = vpop.permute.xlu0 %418
      %422 = vset.pattern.permute.xlu0 0
      %423 = vperm.xlu0 %422, %v401
      %v424 = vpop.permute.xlu0 %423
      %427 = vset.pattern.permute.xlu0 0
      %428 = vperm.xlu0 %427, %v402
      %v429 = vpop.permute.xlu0 %428
      %432 = vset.pattern.permute.xlu0 0
      %433 = vperm.xlu0 %432, %v403
      %v434 = vpop.permute.xlu0 %433
      %437 = vset.pattern.permute.xlu0 0
      %438 = vperm.xlu0 %437, %v404
      %v439 = vpop.permute.xlu0 %438
      %442 = vset.pattern.permute.xlu0 0
      %443 = vperm.xlu0 %442, %v405
      %v444 = vpop.permute.xlu0 %443
      %447 = vset.pattern.permute.xlu0 0
      %448 = vperm.xlu0 %447, %v406
      %v449 = vpop.permute.xlu0 %448
      %452 = vset.pattern.permute.xlu0 0
      %453 = vperm.xlu0 %452, %v407
      %v454 = vpop.permute.xlu0 %453
      %457 = vset.pattern.permute.xlu0 0
      %458 = vperm.xlu0 %457, %v408
      %v459 = vpop.permute.xlu0 %458
      %462 = vset.pattern.permute.xlu0 0
      %463 = vperm.xlu0 %462, %v409
      %v464 = vpop.permute.xlu0 %463
      %467 = vset.pattern.permute.xlu0 0
      %468 = vperm.xlu0 %467, %v410
      %v469 = vpop.permute.xlu0 %468
      %472 = vset.pattern.permute.xlu0 0
      %473 = vperm.xlu0 %472, %v411
      %v474 = vpop.permute.xlu0 %473
      %477 = vset.pattern.permute.xlu0 0
      %478 = vperm.xlu0 %477, %v412
      %v479 = vpop.permute.xlu0 %478
      %482 = vset.pattern.permute.xlu0 0
      %483 = vperm.xlu0 %482, %v413
      %v484 = vpop.permute.xlu0 %483
      %487 = vset.pattern.permute.xlu0 0
      %488 = vperm.xlu0 %487, %v414
      %v489 = vpop.permute.xlu0 %488
      %492 = vset.pattern.permute.xlu0 0
      %493 = vperm.xlu0 %492, %v415
      %v494 = vpop.permute.xlu0 %493
      %v496 = vmul.f32 %v322, %v419
      %v497 = vmul.f32 %v327, %v424
      %v498 = vmul.f32 %v332, %v429
      %v499 = vmul.f32 %v337, %v434
      %v500 = vmul.f32 %v342, %v439
      %v501 = vmul.f32 %v347, %v444
      %v502 = vmul.f32 %v352, %v449
      %v503 = vmul.f32 %v357, %v454
      %v504 = vmul.f32 %v362, %v459
      %v505 = vmul.f32 %v367, %v464
      %v506 = vmul.f32 %v372, %v469
      %v507 = vmul.f32 %v377, %v474
      %v508 = vmul.f32 %v382, %v479
      %v509 = vmul.f32 %v387, %v484
      %v510 = vmul.f32 %v392, %v489
      %v511 = vmul.f32 %v397, %v494
      %v512 = vld [vmem:[%s3] sm:$0x1]
      %v514 = vlaneseq
      %v515 = vshrl.u32 %v514, 7
      %v516 = vsub.s32 0, %v515
      %v517 = vrot.slane %v512, %v516
      %v519 = vadd.f32 %v496, %v517
      %v520 = vadd.f32 %v497, %v517
      %v521 = vadd.f32 %v498, %v517
      %v522 = vadd.f32 %v499, %v517
      %v523 = vadd.f32 %v500, %v517
      %v524 = vadd.f32 %v501, %v517
      %v525 = vadd.f32 %v502, %v517
      %v526 = vadd.f32 %v503, %v517
      %v527 = vadd.f32 %v504, %v517
      %v528 = vadd.f32 %v505, %v517
      %v529 = vadd.f32 %v506, %v517
      %v530 = vadd.f32 %v507, %v517
      %v531 = vadd.f32 %v508, %v517
      %v532 = vadd.f32 %v509, %v517
      %v533 = vadd.f32 %v510, %v517
      %v534 = vadd.f32 %v511, %v517
      %v535 = vmax.f32 %v519, 0.0
      %v536 = vmax.f32 %v520, 0.0
      %v537 = vmax.f32 %v521, 0.0
      %v538 = vmax.f32 %v522, 0.0
      %v539 = vmax.f32 %v523, 0.0
      %v540 = vmax.f32 %v524, 0.0
      %v541 = vmax.f32 %v525, 0.0
      %v542 = vmax.f32 %v526, 0.0
      %v543 = vmax.f32 %v527, 0.0
      %v544 = vmax.f32 %v528, 0.0
      %v545 = vmax.f32 %v529, 0.0
      %v546 = vmax.f32 %v530, 0.0
      %v547 = vmax.f32 %v531, 0.0
      %v548 = vmax.f32 %v532, 0.0
      %v549 = vmax.f32 %v533, 0.0
      %v550 = vmax.f32 %v534, 0.0
      %vm551 = vcmask 523264
      %552 = vst.msk [vmem:[%s221] sm:$0xff] %vm551, %v535
      %553 = vst.msk [vmem:[%s221 + $0x8] sm:$0xff] %vm551, %v536
      %554 = vst.msk [vmem:[%s221 + $0x10] sm:$0xff] %vm551, %v537
      %555 = vst.msk [vmem:[%s221 + $0x18] sm:$0xff] %vm551, %v538
      %556 = vst.msk [vmem:[%s221 + $0x20] sm:$0xff] %vm551, %v539
      %557 = vst.msk [vmem:[%s221 + $0x28] sm:$0xff] %vm551, %v540
      %558 = vst.msk [vmem:[%s221 + $0x30] sm:$0xff] %vm551, %v541
      %559 = vst.msk [vmem:[%s221 + $0x38] sm:$0xff] %vm551, %v542
      %560 = vst.msk [vmem:[%s221 + $0x40] sm:$0xff] %vm551, %v543
      %561 = vst.msk [vmem:[%s221 + $0x48] sm:$0xff] %vm551, %v544
      %562 = vst.msk [vmem:[%s221 + $0x50] sm:$0xff] %vm551, %v545
      %563 = vst.msk [vmem:[%s221 + $0x58] sm:$0xff] %vm551, %v546
      %564 = vst.msk [vmem:[%s221 + $0x60] sm:$0xff] %vm551, %v547
      %565 = vst.msk [vmem:[%s221 + $0x68] sm:$0xff] %vm551, %v548
      %566 = vst.msk [vmem:[%s221 + $0x70] sm:$0xff] %vm551, %v549
      %567 = vst.msk [vmem:[%s221 + $0x78] sm:$0xff] %vm551, %v550
      %s568 = smul.u32 16, %s15
      %p569 = scmp.lt.s32.totalorder %s568, 31
      %s570 = scalar_select %p569, %s568, 31
      %s571 = smul.addr %s570, 8
      %s572 = scalar_lea.vmem %s4, %s571
      // Predicated region
      $region37: #{tpu_custom_call.1} parent=35 // pred_check
        %p573 = pneg %p127
      $region38: #{tpu_custom_call.1} parent=35 // pred_check_branch
        %575 = sbr.rel (%p573) target = $region40
      $region39: #{tpu_custom_call.1} parent=35 // pred_region
        %s576 = smul.u32 16, %s15
      $region40: #{tpu_custom_call.1} parent=35 // pred_fallthru
        _
    $region36: #{tpu_custom_call.1} parent=5 // pred_fallthru
      _
    %p577 = scmp.le.s32.totalorder 2, %s10
    // Predicated region
    $region41: #{tpu_custom_call.1} parent=5 // pred_check
      %p578 = pneg %p577
    $region42: #{tpu_custom_call.1} parent=5 // pred_check_branch
      %580 = sbr.rel (%p578) target = $region44
    $region43: #{tpu_custom_call.1} parent=5 // pred_region
      %s581 = ssub.s32 %s10, 2
      // Predicated region
      $region45: #{tpu_custom_call.1} parent=43 // pred_check
        %p582 = pneg %p133
      $region46: #{tpu_custom_call.1} parent=43 // pred_check_branch
        %584 = sbr.rel (%p582) target = $region48
      $region47: #{tpu_custom_call.1} parent=43 // pred_region
        %s585 = smul.u32 16, %s16
        %p586 = scmp.lt.s32.totalorder %s585, 31
        %s587 = scalar_select %p586, %s585, 31
        %s588 = smul.addr %s587, 8
        %s589 = scalar_lea.vmem %s4, %s588
      $region48: #{tpu_custom_call.1} parent=43 // pred_fallthru
        _
    $region44: #{tpu_custom_call.1} parent=5 // pred_fallthru
      _
  $region6: #{tpu_custom_call.1} parent=0 // loop_footer
    %s14 = sadd.s32 1, %s10
  $region7: #{tpu_custom_call.1} parent=0 // loop_footer_branch
    %9 = sbr.rel target = $region3
  $region8: #{tpu_custom_call.1} parent=0 // loop_exit
    _

</llo_original>
